<compile_context>
chip_gen: v7x
topology: tpu7x:2x2x1
jax: 0.10.0
libtpu: 0.0.40
codegen_flags: <defaults>
</compile_context>

<pallas_src>
import functools
import math

import jax
import jax.numpy as jnp
from jax.experimental import pallas as pl
from jax.experimental.pallas import tpu as pltpu

NUM_LAYERS = 8
NEG_SLOPE = 0.2
LR_MULTIPLIER = 0.01


def _round_up(n: int, m: int) -> int:
    return ((n + m - 1) // m) * m


def mapping_mlp_kernel(x_ref, w0_ref, w_ref, b_ref, o_ref, *, num_layers: int):
    # x_ref : (TB, in_dim)                 bf16  (x or concat([x, condition]), pre-cast)
    # w0_ref: (in_dim, DPAD)               bf16  layer-0 weight, (in, out), lr-scaled
    # w_ref : (num_layers-1, DPAD, DPAD)   bf16  layers 1.., (in, out), lr-scaled
    # b_ref : (num_layers, 1, DPAD)        f32   lr-scaled biases (zero in padded lanes)
    # o_ref : (TB, DPAD)                   f32 or bf16
    y = jnp.dot(x_ref[...], w0_ref[...],
                preferred_element_type=jnp.float32) + b_ref[0]
    h = jnp.maximum(y, NEG_SLOPE * y)                       # LeakyReLU(0.2), f32
    for i in range(1, num_layers):                          # static unroll
        y = jnp.dot(h.astype(jnp.bfloat16), w_ref[i - 1],
                    preferred_element_type=jnp.float32) + b_ref[i]
        h = jnp.maximum(y, NEG_SLOPE * y)
    o_ref[...] = h.astype(o_ref.dtype)


def init_params(key, latent_dim, style_dim, condition_dim, num_layers=NUM_LAYERS):
    """Raw EqualLinear params: weight_i ~ randn(style_dim, in_i).

    (PyTorch init has zero biases; random biases here exercise the bias path —
    forward semantics are unchanged.)
    """
    in_dim = latent_dim + condition_dim
    keys = jax.random.split(key, 2 * num_layers)
    weights, biases = [], []
    cur_in = in_dim
    for i in range(num_layers):
        weights.append(jax.random.normal(keys[2 * i], (style_dim, cur_in), jnp.float32))
        biases.append(jax.random.normal(keys[2 * i + 1], (style_dim,), jnp.float32))
        cur_in = style_dim
    return weights, biases


def pack_params(weights, biases, latent_dim, style_dim, condition_dim):
    """Fold equalized-LR scales, transpose to (in, out), pad out-features to 128, cast bf16."""
    num_layers = len(weights)
    in_dim = latent_dim + condition_dim
    dpad = _round_up(style_dim, 128)

    # Layer 0: (style_dim, in_dim) -> scaled -> transposed (in_dim, dpad).
    scale0 = 1.0 / math.sqrt(in_dim) * LR_MULTIPLIER
    w0 = jnp.pad((weights[0] * scale0).T,
                 ((0, 0), (0, dpad - style_dim))).astype(jnp.bfloat16)

    # Layers 1..: (style_dim -> style_dim), padded to (dpad, dpad); padded rows/cols = 0.
    scale = 1.0 / math.sqrt(style_dim) * LR_MULTIPLIER
    w_rest = jnp.zeros((num_layers - 1, dpad, dpad), jnp.float32)
    for i in range(1, num_layers):
        w_rest = w_rest.at[i - 1, :style_dim, :style_dim].set((weights[i] * scale).T)
    w_rest = w_rest.astype(jnp.bfloat16)

    b_all = jnp.zeros((num_layers, 1, dpad), jnp.float32)
    for i in range(num_layers):
        b_all = b_all.at[i, 0, :style_dim].set(biases[i] * LR_MULTIPLIER)

    return dict(w0=w0, w_rest=w_rest, b_all=b_all,
                latent_dim=latent_dim, style_dim=style_dim,
                condition_dim=condition_dim, dpad=dpad)


def mapping_forward(x, condition, params, *, max_tile_b=1024,
                    out_dtype=jnp.float32, return_padded=False):
    """MappingNetwork.forward: concat(x, condition) -> num_layers x [EqualLinear + LeakyReLU]."""
    style_dim = params["style_dim"]
    condition_dim = params["condition_dim"]
    dpad = params["dpad"]
    num_layers = params["b_all"].shape[0]
    B = x.shape[0]

    # Match PyTorch semantics: the first layer was built for latent_dim + condition_dim
    # inputs, so a condition must be supplied iff condition_dim > 0.
    if condition_dim > 0:
        if condition is None:
            raise ValueError("condition_dim > 0 but no condition was provided")
        x_in = jnp.concatenate([x, condition], axis=1)      # tiny host-side concat
    else:
        x_in = x
    x_in = x_in.astype(jnp.bfloat16)                        # halve input HBM bytes
    in_dim = x_in.shape[1]

    # Batch tiling: big tiles to amortize per-step overhead; ragged batches padded.
    tile_b = min(max_tile_b, _round_up(B, 16))
    if B > 256:
        # Keep >= 2 grid steps so both v7x TensorCores get work (free on v5e/v6e).
        tile_b = min(tile_b, _round_up(-(-B // 2), 16))
    b_pad = _round_up(B, tile_b)
    if b_pad != B:
        x_in = jnp.pad(x_in, ((0, b_pad - B), (0, 0)))
    grid = (b_pad // tile_b,)

    kernel = functools.partial(mapping_mlp_kernel, num_layers=num_layers)
    out = pl.pallas_call(
        kernel,
        out_shape=jax.ShapeDtypeStruct((b_pad, dpad), out_dtype),
        grid_spec=pltpu.PrefetchScalarGridSpec(
            num_scalar_prefetch=0,
            grid=grid,
            in_specs=[
                pl.BlockSpec((tile_b, in_dim), lambda i: (i, 0)),
                pl.BlockSpec(params["w0"].shape, lambda i: (0, 0)),
                pl.BlockSpec(params["w_rest"].shape, lambda i: (0, 0, 0)),
                pl.BlockSpec(params["b_all"].shape, lambda i: (0, 0, 0)),
            ],
            out_specs=pl.BlockSpec((tile_b, dpad), lambda i: (i, 0)),
        ),
        compiler_params=pltpu.CompilerParams(
            dimension_semantics=("parallel",)),
    )(x_in, params["w0"], params["w_rest"], params["b_all"])

    if return_padded:
        # Caller consumes the lane-dense (b_pad, dpad) slab directly (no extra HBM pass).
        return out
    return out[:B, :style_dim]


if __name__ == "__main__":
    latent_dim, style_dim, condition_dim = 32, 64, 16
    batch = 16

    key = jax.random.PRNGKey(0)
    k_x, k_c, k_p = jax.random.split(key, 3)
    x = jax.random.normal(k_x, (batch, latent_dim), jnp.float32)
    condition = jax.random.normal(k_c, (batch, condition_dim), jnp.float32)

    weights, biases = init_params(k_p, latent_dim, style_dim, condition_dim)
    params = pack_params(weights, biases, latent_dim, style_dim, condition_dim)

    out = mapping_forward(x, condition, params)
    jax.block_until_ready(out)

    # Pure-JAX reference mirroring the kernel numerics (bf16 MXU operands,
    # f32 accumulation / bias / LeakyReLU) of MappingNetwork.forward.
    h = jnp.concatenate([x, condition], axis=1)
    cur_in = latent_dim + condition_dim
    for i in range(NUM_LAYERS):
        s = 1.0 / math.sqrt(cur_in) * LR_MULTIPLIER
        w = (weights[i] * s).astype(jnp.bfloat16)              # (out, in)
        b = biases[i] * LR_MULTIPLIER
        y = jnp.dot(h.astype(jnp.bfloat16), w.T,
                    preferred_element_type=jnp.float32) + b
        h = jnp.maximum(y, NEG_SLOPE * y)
        cur_in = style_dim

    assert out.shape == (batch, style_dim)
    assert jnp.allclose(out, h, rtol=2e-2, atol=1e-5), (
        "max abs err = %e" % float(jnp.max(jnp.abs(out - h))))

    print("KERNEL_OK")
</pallas_src>

<mosaic_0001>
module attributes {stable_mosaic.version = 11 : i64} {
  func.func @mapping_mlp_kernel(%arg0: i32, %arg1: memref<16x48xbf16, #tpu.memory_space<vmem>>, %arg2: memref<48x128xbf16, #tpu.memory_space<vmem>>, %arg3: memref<7x128x128xbf16, #tpu.memory_space<vmem>>, %arg4: memref<8x1x128xf32, #tpu.memory_space<vmem>>, %arg5: memref<16x128xf32, #tpu.memory_space<vmem>>) attributes {dimension_semantics = [#tpu.dimension_semantics<parallel>], iteration_bounds = array<i64: 1>, scalar_prefetch = 0 : i64, scratch_operands = 0 : i64, tpu.core_type = #tpu.core_type<tc>, window_params = [{transform_indices = @transform_0, window_bounds = array<i64: 16, 48>}, {pipeline_mode = #tpu.pipeline_mode<synchronous>, transform_indices = @transform_1, window_bounds = array<i64: 48, 128>}, {pipeline_mode = #tpu.pipeline_mode<synchronous>, transform_indices = @transform_2, window_bounds = array<i64: 7, 128, 128>}, {pipeline_mode = #tpu.pipeline_mode<synchronous>, transform_indices = @transform_3, window_bounds = array<i64: 8, 1, 128>}, {transform_indices = @transform_4, window_bounds = array<i64: 16, 128>}]} {
    %c0 = arith.constant 0 : index
    %c0_0 = arith.constant 0 : index
    %0 = vector.load %arg1[%c0, %c0_0] : memref<16x48xbf16, #tpu.memory_space<vmem>>, vector<16x48xbf16>
    %c0_1 = arith.constant 0 : index
    %c0_2 = arith.constant 0 : index
    %1 = vector.load %arg2[%c0_1, %c0_2] : memref<48x128xbf16, #tpu.memory_space<vmem>>, vector<48x128xbf16>
    %cst = arith.constant dense<0.000000e+00> : vector<16x128xf32>
    %2 = tpu.matmul %0, %1, %cst {dimension_numbers = #tpu.dot_dimension_numbers<[1], [0], [0], [1], [0, 0, 1, 1], [], []>} : vector<16x48xbf16>, vector<48x128xbf16>, vector<16x128xf32> -> vector<16x128xf32>
    %c0_3 = arith.constant 0 : index
    %c0_4 = arith.constant 0 : index
    %c0_5 = arith.constant 0 : index
    %3 = vector.load %arg4[%c0_3, %c0_4, %c0_5] : memref<8x1x128xf32, #tpu.memory_space<vmem>>, vector<1x1x128xf32>
    %4 = vector.shape_cast %3 : vector<1x1x128xf32> to vector<1x128xf32>
    %5 = vector.broadcast %4 : vector<1x128xf32> to vector<16x128xf32>
    %6 = arith.addf %2, %5 : vector<16x128xf32>
    %cst_6 = arith.constant 2.000000e-01 : f32
    %7 = vector.broadcast %cst_6 : f32 to vector<16x128xf32>
    %8 = arith.mulf %7, %6 : vector<16x128xf32>
    %9 = arith.maximumf %6, %8 : vector<16x128xf32>
    %10 = arith.truncf %9 : vector<16x128xf32> to vector<16x128xbf16>
    %c0_7 = arith.constant 0 : index
    %c0_8 = arith.constant 0 : index
    %c0_9 = arith.constant 0 : index
    %11 = vector.load %arg3[%c0_7, %c0_8, %c0_9] : memref<7x128x128xbf16, #tpu.memory_space<vmem>>, vector<1x128x128xbf16>
    %12 = vector.shape_cast %11 : vector<1x128x128xbf16> to vector<128x128xbf16>
    %cst_10 = arith.constant dense<0.000000e+00> : vector<16x128xf32>
    %13 = tpu.matmul %10, %12, %cst_10 {dimension_numbers = #tpu.dot_dimension_numbers<[1], [0], [0], [1], [0, 0, 1, 1], [], []>} : vector<16x128xbf16>, vector<128x128xbf16>, vector<16x128xf32> -> vector<16x128xf32>
    %c1 = arith.constant 1 : index
    %c0_11 = arith.constant 0 : index
    %c0_12 = arith.constant 0 : index
    %14 = vector.load %arg4[%c1, %c0_11, %c0_12] : memref<8x1x128xf32, #tpu.memory_space<vmem>>, vector<1x1x128xf32>
    %15 = vector.shape_cast %14 : vector<1x1x128xf32> to vector<1x128xf32>
    %16 = vector.broadcast %15 : vector<1x128xf32> to vector<16x128xf32>
    %17 = arith.addf %13, %16 : vector<16x128xf32>
    %cst_13 = arith.constant 2.000000e-01 : f32
    %18 = vector.broadcast %cst_13 : f32 to vector<16x128xf32>
    %19 = arith.mulf %18, %17 : vector<16x128xf32>
    %20 = arith.maximumf %17, %19 : vector<16x128xf32>
    %21 = arith.truncf %20 : vector<16x128xf32> to vector<16x128xbf16>
    %c1_14 = arith.constant 1 : index
    %c0_15 = arith.constant 0 : index
    %c0_16 = arith.constant 0 : index
    %22 = vector.load %arg3[%c1_14, %c0_15, %c0_16] : memref<7x128x128xbf16, #tpu.memory_space<vmem>>, vector<1x128x128xbf16>
    %23 = vector.shape_cast %22 : vector<1x128x128xbf16> to vector<128x128xbf16>
    %cst_17 = arith.constant dense<0.000000e+00> : vector<16x128xf32>
    %24 = tpu.matmul %21, %23, %cst_17 {dimension_numbers = #tpu.dot_dimension_numbers<[1], [0], [0], [1], [0, 0, 1, 1], [], []>} : vector<16x128xbf16>, vector<128x128xbf16>, vector<16x128xf32> -> vector<16x128xf32>
    %c2 = arith.constant 2 : index
    %c0_18 = arith.constant 0 : index
    %c0_19 = arith.constant 0 : index
    %25 = vector.load %arg4[%c2, %c0_18, %c0_19] : memref<8x1x128xf32, #tpu.memory_space<vmem>>, vector<1x1x128xf32>
    %26 = vector.shape_cast %25 : vector<1x1x128xf32> to vector<1x128xf32>
    %27 = vector.broadcast %26 : vector<1x128xf32> to vector<16x128xf32>
    %28 = arith.addf %24, %27 : vector<16x128xf32>
    %cst_20 = arith.constant 2.000000e-01 : f32
    %29 = vector.broadcast %cst_20 : f32 to vector<16x128xf32>
    %30 = arith.mulf %29, %28 : vector<16x128xf32>
    %31 = arith.maximumf %28, %30 : vector<16x128xf32>
    %32 = arith.truncf %31 : vector<16x128xf32> to vector<16x128xbf16>
    %c2_21 = arith.constant 2 : index
    %c0_22 = arith.constant 0 : index
    %c0_23 = arith.constant 0 : index
    %33 = vector.load %arg3[%c2_21, %c0_22, %c0_23] : memref<7x128x128xbf16, #tpu.memory_space<vmem>>, vector<1x128x128xbf16>
    %34 = vector.shape_cast %33 : vector<1x128x128xbf16> to vector<128x128xbf16>
    %cst_24 = arith.constant dense<0.000000e+00> : vector<16x128xf32>
    %35 = tpu.matmul %32, %34, %cst_24 {dimension_numbers = #tpu.dot_dimension_numbers<[1], [0], [0], [1], [0, 0, 1, 1], [], []>} : vector<16x128xbf16>, vector<128x128xbf16>, vector<16x128xf32> -> vector<16x128xf32>
    %c3 = arith.constant 3 : index
    %c0_25 = arith.constant 0 : index
    %c0_26 = arith.constant 0 : index
    %36 = vector.load %arg4[%c3, %c0_25, %c0_26] : memref<8x1x128xf32, #tpu.memory_space<vmem>>, vector<1x1x128xf32>
    %37 = vector.shape_cast %36 : vector<1x1x128xf32> to vector<1x128xf32>
    %38 = vector.broadcast %37 : vector<1x128xf32> to vector<16x128xf32>
    %39 = arith.addf %35, %38 : vector<16x128xf32>
    %cst_27 = arith.constant 2.000000e-01 : f32
    %40 = vector.broadcast %cst_27 : f32 to vector<16x128xf32>
    %41 = arith.mulf %40, %39 : vector<16x128xf32>
    %42 = arith.maximumf %39, %41 : vector<16x128xf32>
    %43 = arith.truncf %42 : vector<16x128xf32> to vector<16x128xbf16>
    %c3_28 = arith.constant 3 : index
    %c0_29 = arith.constant 0 : index
    %c0_30 = arith.constant 0 : index
    %44 = vector.load %arg3[%c3_28, %c0_29, %c0_30] : memref<7x128x128xbf16, #tpu.memory_space<vmem>>, vector<1x128x128xbf16>
    %45 = vector.shape_cast %44 : vector<1x128x128xbf16> to vector<128x128xbf16>
    %cst_31 = arith.constant dense<0.000000e+00> : vector<16x128xf32>
    %46 = tpu.matmul %43, %45, %cst_31 {dimension_numbers = #tpu.dot_dimension_numbers<[1], [0], [0], [1], [0, 0, 1, 1], [], []>} : vector<16x128xbf16>, vector<128x128xbf16>, vector<16x128xf32> -> vector<16x128xf32>
    %c4 = arith.constant 4 : index
    %c0_32 = arith.constant 0 : index
    %c0_33 = arith.constant 0 : index
    %47 = vector.load %arg4[%c4, %c0_32, %c0_33] : memref<8x1x128xf32, #tpu.memory_space<vmem>>, vector<1x1x128xf32>
    %48 = vector.shape_cast %47 : vector<1x1x128xf32> to vector<1x128xf32>
    %49 = vector.broadcast %48 : vector<1x128xf32> to vector<16x128xf32>
    %50 = arith.addf %46, %49 : vector<16x128xf32>
    %cst_34 = arith.constant 2.000000e-01 : f32
    %51 = vector.broadcast %cst_34 : f32 to vector<16x128xf32>
    %52 = arith.mulf %51, %50 : vector<16x128xf32>
    %53 = arith.maximumf %50, %52 : vector<16x128xf32>
    %54 = arith.truncf %53 : vector<16x128xf32> to vector<16x128xbf16>
    %c4_35 = arith.constant 4 : index
    %c0_36 = arith.constant 0 : index
    %c0_37 = arith.constant 0 : index
    %55 = vector.load %arg3[%c4_35, %c0_36, %c0_37] : memref<7x128x128xbf16, #tpu.memory_space<vmem>>, vector<1x128x128xbf16>
    %56 = vector.shape_cast %55 : vector<1x128x128xbf16> to vector<128x128xbf16>
    %cst_38 = arith.constant dense<0.000000e+00> : vector<16x128xf32>
    %57 = tpu.matmul %54, %56, %cst_38 {dimension_numbers = #tpu.dot_dimension_numbers<[1], [0], [0], [1], [0, 0, 1, 1], [], []>} : vector<16x128xbf16>, vector<128x128xbf16>, vector<16x128xf32> -> vector<16x128xf32>
    %c5 = arith.constant 5 : index
    %c0_39 = arith.constant 0 : index
    %c0_40 = arith.constant 0 : index
    %58 = vector.load %arg4[%c5, %c0_39, %c0_40] : memref<8x1x128xf32, #tpu.memory_space<vmem>>, vector<1x1x128xf32>
    %59 = vector.shape_cast %58 : vector<1x1x128xf32> to vector<1x128xf32>
    %60 = vector.broadcast %59 : vector<1x128xf32> to vector<16x128xf32>
    %61 = arith.addf %57, %60 : vector<16x128xf32>
    %cst_41 = arith.constant 2.000000e-01 : f32
    %62 = vector.broadcast %cst_41 : f32 to vector<16x128xf32>
    %63 = arith.mulf %62, %61 : vector<16x128xf32>
    %64 = arith.maximumf %61, %63 : vector<16x128xf32>
    %65 = arith.truncf %64 : vector<16x128xf32> to vector<16x128xbf16>
    %c5_42 = arith.constant 5 : index
    %c0_43 = arith.constant 0 : index
    %c0_44 = arith.constant 0 : index
    %66 = vector.load %arg3[%c5_42, %c0_43, %c0_44] : memref<7x128x128xbf16, #tpu.memory_space<vmem>>, vector<1x128x128xbf16>
    %67 = vector.shape_cast %66 : vector<1x128x128xbf16> to vector<128x128xbf16>
    %cst_45 = arith.constant dense<0.000000e+00> : vector<16x128xf32>
    %68 = tpu.matmul %65, %67, %cst_45 {dimension_numbers = #tpu.dot_dimension_numbers<[1], [0], [0], [1], [0, 0, 1, 1], [], []>} : vector<16x128xbf16>, vector<128x128xbf16>, vector<16x128xf32> -> vector<16x128xf32>
    %c6 = arith.constant 6 : index
    %c0_46 = arith.constant 0 : index
    %c0_47 = arith.constant 0 : index
    %69 = vector.load %arg4[%c6, %c0_46, %c0_47] : memref<8x1x128xf32, #tpu.memory_space<vmem>>, vector<1x1x128xf32>
    %70 = vector.shape_cast %69 : vector<1x1x128xf32> to vector<1x128xf32>
    %71 = vector.broadcast %70 : vector<1x128xf32> to vector<16x128xf32>
    %72 = arith.addf %68, %71 : vector<16x128xf32>
    %cst_48 = arith.constant 2.000000e-01 : f32
    %73 = vector.broadcast %cst_48 : f32 to vector<16x128xf32>
    %74 = arith.mulf %73, %72 : vector<16x128xf32>
    %75 = arith.maximumf %72, %74 : vector<16x128xf32>
    %76 = arith.truncf %75 : vector<16x128xf32> to vector<16x128xbf16>
    %c6_49 = arith.constant 6 : index
    %c0_50 = arith.constant 0 : index
    %c0_51 = arith.constant 0 : index
    %77 = vector.load %arg3[%c6_49, %c0_50, %c0_51] : memref<7x128x128xbf16, #tpu.memory_space<vmem>>, vector<1x128x128xbf16>
    %78 = vector.shape_cast %77 : vector<1x128x128xbf16> to vector<128x128xbf16>
    %cst_52 = arith.constant dense<0.000000e+00> : vector<16x128xf32>
    %79 = tpu.matmul %76, %78, %cst_52 {dimension_numbers = #tpu.dot_dimension_numbers<[1], [0], [0], [1], [0, 0, 1, 1], [], []>} : vector<16x128xbf16>, vector<128x128xbf16>, vector<16x128xf32> -> vector<16x128xf32>
    %c7 = arith.constant 7 : index
    %c0_53 = arith.constant 0 : index
    %c0_54 = arith.constant 0 : index
    %80 = vector.load %arg4[%c7, %c0_53, %c0_54] : memref<8x1x128xf32, #tpu.memory_space<vmem>>, vector<1x1x128xf32>
    %81 = vector.shape_cast %80 : vector<1x1x128xf32> to vector<1x128xf32>
    %82 = vector.broadcast %81 : vector<1x128xf32> to vector<16x128xf32>
    %83 = arith.addf %79, %82 : vector<16x128xf32>
    %cst_55 = arith.constant 2.000000e-01 : f32
    %84 = vector.broadcast %cst_55 : f32 to vector<16x128xf32>
    %85 = arith.mulf %84, %83 : vector<16x128xf32>
    %86 = arith.maximumf %83, %85 : vector<16x128xf32>
    %c0_56 = arith.constant 0 : index
    %c0_57 = arith.constant 0 : index
    %87 = vector.load %arg5[%c0_56, %c0_57] : memref<16x128xf32, #tpu.memory_space<vmem>>, vector<16x128xf32>
    tpu.vector_store %arg5[%c0_56, %c0_57], %86 {strides = array<i32>} : memref<16x128xf32, #tpu.memory_space<vmem>>, vector<16x128xf32>,
    return
  }
  func.func @transform_0(%arg0: i32) -> (i32, i32) {
    %c0_i32 = arith.constant 0 : i32
    %c0_i32_0 = arith.constant 0 : i32
    return %arg0, %c0_i32 : i32, i32
  }
  func.func @transform_1(%arg0: i32) -> (i32, i32) {
    %c0_i32 = arith.constant 0 : i32
    %c0_i32_0 = arith.constant 0 : i32
    %c0_i32_1 = arith.constant 0 : i32
    return %c0_i32, %c0_i32_0 : i32, i32
  }
  func.func @transform_2(%arg0: i32) -> (i32, i32, i32) {
    %c0_i32 = arith.constant 0 : i32
    %c0_i32_0 = arith.constant 0 : i32
    %c0_i32_1 = arith.constant 0 : i32
    %c0_i32_2 = arith.constant 0 : i32
    return %c0_i32, %c0_i32_0, %c0_i32_1 : i32, i32, i32
  }
  func.func @transform_3(%arg0: i32) -> (i32, i32, i32) {
    %c0_i32 = arith.constant 0 : i32
    %c0_i32_0 = arith.constant 0 : i32
    %c0_i32_1 = arith.constant 0 : i32
    %c0_i32_2 = arith.constant 0 : i32
    return %c0_i32, %c0_i32_0, %c0_i32_1 : i32, i32, i32
  }
  func.func @transform_4(%arg0: i32) -> (i32, i32) {
    %c0_i32 = arith.constant 0 : i32
    %c0_i32_0 = arith.constant 0 : i32
    return %arg0, %c0_i32 : i32, i32
  }
}

</mosaic_0001>

<llo_original>
// kernel: tpu_custom_call.1
$region0: #{tpu_custom_call.1}
  #allocation0 [shape = 'u32[]', space=smem, size = 0x4, offset = 0x4, fixed_abs, tag = 'smem constant byte address 0x4 - core index']
  #allocation1 [shape = 'u32[144,128]{1,0:T(1,128)}', space=vmem, size = 0x12000, scoped, tag = 'internal scratch']
  %s0 = inlined_call_operand.hbm [shape: bf16[16,48], index: 0, kind: input, shape index: {}]
  %s1 = inlined_call_operand.hbm [shape: bf16[48,128], index: 1, kind: input, shape index: {}]
  %s2 = inlined_call_operand.hbm [shape: bf16[7,128,128], index: 2, kind: input, shape index: {}]
  %s3 = inlined_call_operand.vmem [shape: f32[8,1,128], index: 3, kind: input, shape index: {}]
  %s4 = inlined_call_operand.hbm [shape: f32[16,128], index: 4, kind: output, shape index: {}]
  %s5 = sld [smem:[#allocation0]]
  $region38: #{tpu_custom_call.1} parent=0
    _
  %s7 = ssub.s32 1, %s5
  %s8 = scalar_select 0, %s7, %s5
  $region1: #{tpu_custom_call.1} parent=0
    #allocation2 [shape = 'u8[4096]{0}', space=vmem, size = 0x1000, scoped, tag = 'input window, operand 0, single buffered']
    #allocation3 [shape = 's32[1]{0}', space=sflag, size = 0x4, scoped, tag = 'scoped memory for tpu_custom_call.1']
    #allocation4 [shape = 's32[1]{0}', space=sflag, size = 0x4, scoped, tag = 'scoped memory for tpu_custom_call.1']
    #allocation5 [shape = 'u8[12288]{0}', space=vmem, size = 0x3000, scoped, tag = 'input window, operand 1, single buffered']
    #allocation6 [shape = 's32[1]{0}', space=sflag, size = 0x4, scoped, tag = 'scoped memory for tpu_custom_call.1']
    #allocation7 [shape = 'u8[229376]{0}', space=vmem, size = 0x38000, scoped, tag = 'input window, operand 2, single buffered']
    #allocation8 [shape = 'u8[8192]{0}', space=vmem, size = 0x2000, scoped, tag = 'output window, operand 0, single buffered']
    %9 = vsyncpa [#allocation3], 0
    %10 = vsyncpa [#allocation6], 0
    %11 = vsyncpa [#allocation4], 0
    // Predicated region
    $region2: #{tpu_custom_call.1} parent=1 // pred_check
      _
    $region3: #{tpu_custom_call.1} parent=1 // pred_check_branch
      %13 = sbr.rel (0) target = $region5
    $region4: #{tpu_custom_call.1} parent=1 // pred_region
      %s15 = ssub.s32 128, 128
      %16 = vsyncadd [#allocation3], %s15
      %s17 = sshll.u32 [#allocation2], 4
      %s18 = int_to_ptr.vmem [resolvable:$true] %s17
      %23 = dma.hbm_to_vmem [thread:$0]  %s0, 128, %s18, [#allocation3], 64, 64, 4
    $region5: #{tpu_custom_call.1} parent=1 // pred_fallthru
      _
    // Predicated region
    $region6: #{tpu_custom_call.1} parent=1 // pred_check
      _
    $region7: #{tpu_custom_call.1} parent=1 // pred_check_branch
      %25 = sbr.rel (0) target = $region9
    $region8: #{tpu_custom_call.1} parent=1 // pred_region
      %s27 = ssub.s32 384, 384
      %28 = vsyncadd [#allocation6], %s27
      %s29 = sshll.u32 [#allocation5], 4
      %s30 = int_to_ptr.vmem [resolvable:$true] %s29
      %35 = dma.hbm_to_vmem [thread:$0]  %s1, 384, %s30, [#allocation6], 64, 64, 4
    $region9: #{tpu_custom_call.1} parent=1 // pred_fallthru
      _
    // Predicated region
    $region10: #{tpu_custom_call.1} parent=1 // pred_check
      _
    $region11: #{tpu_custom_call.1} parent=1 // pred_check_branch
      %37 = sbr.rel (0) target = $region13
    $region12: #{tpu_custom_call.1} parent=1 // pred_region
      %s39 = ssub.s32 7168, 7168
      %40 = vsyncadd [#allocation6], %s39
      %s41 = sshll.u32 [#allocation7], 4
      %s42 = int_to_ptr.vmem [resolvable:$true] %s41
      %47 = dma.hbm_to_vmem [thread:$0]  %s2, 7168, %s42, [#allocation6], 64, 64, 4
    $region13: #{tpu_custom_call.1} parent=1 // pred_fallthru
      _
    // Predicated region
    $region14: #{tpu_custom_call.1} parent=1 // pred_check
      _
    $region15: #{tpu_custom_call.1} parent=1 // pred_check_branch
      %49 = sbr.rel (0) target = $region17
    $region16: #{tpu_custom_call.1} parent=1 // pred_region
      _
    $region17: #{tpu_custom_call.1} parent=1 // pred_fallthru
      _
    // Predicated region
    $region18: #{tpu_custom_call.1} parent=1 // pred_check
      _
    $region19: #{tpu_custom_call.1} parent=1 // pred_check_branch
      %51 = sbr.rel (0) target = $region21
    $region20: #{tpu_custom_call.1} parent=1 // pred_region
      %52 = dma.done [#allocation3], 128
    $region21: #{tpu_custom_call.1} parent=1 // pred_fallthru
      _
    // Predicated region
    $region22: #{tpu_custom_call.1} parent=1 // pred_check
      _
    $region23: #{tpu_custom_call.1} parent=1 // pred_check_branch
      %54 = sbr.rel (0) target = $region25
    $region24: #{tpu_custom_call.1} parent=1 // pred_region
      %55 = dma.done [#allocation6], 384
    $region25: #{tpu_custom_call.1} parent=1 // pred_fallthru
      _
    // Predicated region
    $region26: #{tpu_custom_call.1} parent=1 // pred_check
      _
    $region27: #{tpu_custom_call.1} parent=1 // pred_check_branch
      %57 = sbr.rel (0) target = $region29
    $region28: #{tpu_custom_call.1} parent=1 // pred_region
      %58 = dma.done [#allocation6], 7168
    $region29: #{tpu_custom_call.1} parent=1 // pred_fallthru
      _
    %v60 = vld [vmem:[#allocation2] sm:$0xf]
    %v61 = vld [vmem:[#allocation2 + $0x4] sm:$0xf]
    %v62 = vld [vmem:[#allocation5] sm:$0xf]
    %v63 = vld [vmem:[#allocation5 + $0x4] sm:$0xf]
    %v64 = vld [vmem:[#allocation5 + $0x8] sm:$0xf]
    %v65 = vld [vmem:[#allocation5 + $0xc] sm:$0xf]
    %v66 = vld [vmem:[#allocation5 + $0x10] sm:$0xf]
    %v67 = vld [vmem:[#allocation5 + $0x14] sm:$0xf]
    %v68 = vld [vmem:[%s3] sm:$0x1]
    %v70 = vlaneseq
    %v71 = vshrl.u32 %v70, 7
    %v72 = vsub.s32 0, %v71
    %v73 = vrot.slane %v68, %v72
    %v77 = vunpack.c.l.b16 %v60
    %v78 = vunpack.c.l.b16 %v61
    %v79 = vpack.c.b16 %v78, %v77
    %v86 = vunpack.c.l.b16 %v62
    %v87 = vunpack.c.l.b16 %v63
    %v88 = vunpack.c.l.b16 %v64
    %v89 = vunpack.c.l.b16 %v65
    %v90 = vunpack.c.l.b16 %v66
    %v91 = vunpack.c.l.b16 %v67
    %v92 = vpack.c.b16 %v87, %v86
    %v93 = vpack.c.b16 %v89, %v88
    %v94 = vpack.c.b16 %v91, %v90
    %vm98 = vcmask 392192
    %v100 = vsel %vm98, %v79, 0
    %102 = vmatprep.subr.bf16.mxu0 0
    %103 = vmatpush1.bf16.msra.mxu0 %v92
    %104 = vmatprep.subr.bf16.mxu0 0
    %105 = vmatpush1.bf16.msra.mxu0 %v93
    %106 = vmatprep.subr.bf16.mxu0 0
    %107 = vmatpush1.bf16.msra.mxu0 %v94
    %108 = vmatprep.subr.bf16.mxu0 0
    %109 = vmatpush1.bf16.msra.mxu0 0
    %110 = vmatprep.subr.bf16.mxu0 0
    %111 = vmatpush1.bf16.msra.mxu0 0
    %112 = vmatprep.subr.bf16.mxu0 0
    %113 = vmatpush1.bf16.msra.mxu0 0
    %114 = vmatprep.subr.bf16.mxu0 0
    %115 = vmatpush1.bf16.msra.mxu0 0
    %116 = vmatprep.subr.bf16.mxu0 0
    %117 = vmatpush1.bf16.msra.mxu0 0
    %118 = vmatprep.subr.bf16.mxu0 0
    %119 = vmatpush1.bf16.msra.mxu0 0
    %120 = vmatprep.subr.bf16.mxu0 0
    %121 = vmatpush1.bf16.msra.mxu0 0
    %122 = vmatprep.subr.bf16.mxu0 0
    %123 = vmatpush1.bf16.msra.mxu0 0
    %124 = vmatprep.subr.bf16.mxu0 0
    %125 = vmatpush1.bf16.msra.mxu0 0
    %126 = vmatprep.subr.bf16.mxu0 0
    %127 = vmatpush1.bf16.msra.mxu0 0
    %128 = vmatprep.subr.bf16.mxu0 0
    %129 = vmatpush1.bf16.msra.mxu0 0
    %130 = vmatprep.subr.bf16.mxu0 0
    %131 = vmatpush1.bf16.msra.mxu0 0
    %132 = vmatprep.subr.bf16.mxu0 0
    %133 = vmatpush1.bf16.msra.mxu0 0
    %134 = vmatprep.mubr.bf16.mxu0 0
    %135 = vmatmul.mubr.bf16.gmra.mrb[0].mxu0 %v100
    %v136 = vpop.f32.mrb[0].mxu0
    %v137 = vadd.f32 %v73, %v136
    %v138 = vpop.f32.mrb[0].mxu0
    %v139 = vpop.f32.mrb[0].mxu0
    %v140 = vadd.f32 %v73, %v139
    %v141 = vpop.f32.mrb[0].mxu0
    %142 = vdwg.mxu0
    %v143 = vmul.f32 %v137, 0.2
    %v144 = vmul.f32 %v140, 0.2
    %v145 = vmax.f32 %v137, %v143
    %v146 = vmax.f32 %v140, %v144
    %v147 = vpack.c.bf16 %v146, %v145
    %v148 = vld [vmem:[#allocation7] sm:$0xf]
    %v149 = vld [vmem:[#allocation7 + $0x4] sm:$0xf]
    %v150 = vld [vmem:[#allocation7 + $0x8] sm:$0xf]
    %v151 = vld [vmem:[#allocation7 + $0xc] sm:$0xf]
    %v152 = vld [vmem:[#allocation7 + $0x10] sm:$0xf]
    %v153 = vld [vmem:[#allocation7 + $0x14] sm:$0xf]
    %v154 = vld [vmem:[#allocation7 + $0x18] sm:$0xf]
    %v155 = vld [vmem:[#allocation7 + $0x1c] sm:$0xf]
    %v156 = vld [vmem:[#allocation7 + $0x20] sm:$0xf]
    %v157 = vld [vmem:[#allocation7 + $0x24] sm:$0xf]
    %v158 = vld [vmem:[#allocation7 + $0x28] sm:$0xf]
    %v159 = vld [vmem:[#allocation7 + $0x2c] sm:$0xf]
    %v160 = vld [vmem:[#allocation7 + $0x30] sm:$0xf]
    %v161 = vld [vmem:[#allocation7 + $0x34] sm:$0xf]
    %v162 = vld [vmem:[#allocation7 + $0x38] sm:$0xf]
    %v163 = vld [vmem:[#allocation7 + $0x3c] sm:$0xf]
    %s164 = scalar_lea.vmem %s3, 1
    %v165 = vld [vmem:[%s164] sm:$0x1]
    %v167 = vlaneseq
    %v168 = vshrl.u32 %v167, 7
    %v169 = vsub.s32 0, %v168
    %v170 = vrot.slane %v165, %v169
    %v188 = vunpack.c.l.b16 %v148
    %v189 = vunpack.c.l.b16 %v149
    %v190 = vunpack.c.l.b16 %v150
    %v191 = vunpack.c.l.b16 %v151
    %v192 = vunpack.c.l.b16 %v152
    %v193 = vunpack.c.l.b16 %v153
    %v194 = vunpack.c.l.b16 %v154
    %v195 = vunpack.c.l.b16 %v155
    %v196 = vunpack.c.l.b16 %v156
    %v197 = vunpack.c.l.b16 %v157
    %v198 = vunpack.c.l.b16 %v158
    %v199 = vunpack.c.l.b16 %v159
    %v200 = vunpack.c.l.b16 %v160
    %v201 = vunpack.c.l.b16 %v161
    %v202 = vunpack.c.l.b16 %v162
    %v203 = vunpack.c.l.b16 %v163
    %v204 = vpack.c.b16 %v189, %v188
    %v205 = vpack.c.b16 %v191, %v190
    %v206 = vpack.c.b16 %v193, %v192
    %v207 = vpack.c.b16 %v195, %v194
    %v208 = vpack.c.b16 %v197, %v196
    %v209 = vpack.c.b16 %v199, %v198
    %v210 = vpack.c.b16 %v201, %v200
    %v211 = vpack.c.b16 %v203, %v202
    %220 = vmatprep.subr.bf16.mxu0 0
    %221 = vmatpush1.bf16.msra.mxu0 %v204
    %222 = vmatprep.subr.bf16.mxu0 0
    %223 = vmatpush1.bf16.msra.mxu0 %v205
    %224 = vmatprep.subr.bf16.mxu0 0
    %225 = vmatpush1.bf16.msra.mxu0 %v206
    %226 = vmatprep.subr.bf16.mxu0 0
    %227 = vmatpush1.bf16.msra.mxu0 %v207
    %228 = vmatprep.subr.bf16.mxu0 0
    %229 = vmatpush1.bf16.msra.mxu0 %v208
    %230 = vmatprep.subr.bf16.mxu0 0
    %231 = vmatpush1.bf16.msra.mxu0 %v209
    %232 = vmatprep.subr.bf16.mxu0 0
    %233 = vmatpush1.bf16.msra.mxu0 %v210
    %234 = vmatprep.subr.bf16.mxu0 0
    %235 = vmatpush1.bf16.msra.mxu0 %v211
    %236 = vmatprep.subr.bf16.mxu0 0
    %237 = vmatpush1.bf16.msra.mxu0 0
    %238 = vmatprep.subr.bf16.mxu0 0
    %239 = vmatpush1.bf16.msra.mxu0 0
    %240 = vmatprep.subr.bf16.mxu0 0
    %241 = vmatpush1.bf16.msra.mxu0 0
    %242 = vmatprep.subr.bf16.mxu0 0
    %243 = vmatpush1.bf16.msra.mxu0 0
    %244 = vmatprep.subr.bf16.mxu0 0
    %245 = vmatpush1.bf16.msra.mxu0 0
    %246 = vmatprep.subr.bf16.mxu0 0
    %247 = vmatpush1.bf16.msra.mxu0 0
    %248 = vmatprep.subr.bf16.mxu0 0
    %249 = vmatpush1.bf16.msra.mxu0 0
    %250 = vmatprep.subr.bf16.mxu0 0
    %251 = vmatpush1.bf16.msra.mxu0 0
    %252 = vmatprep.mubr.bf16.mxu0 0
    %253 = vmatmul.mubr.bf16.gmra.mrb[0].mxu0 %v147
    %v254 = vpop.f32.mrb[0].mxu0
    %v255 = vadd.f32 %v170, %v254
    %v256 = vpop.f32.mrb[0].mxu0
    %v257 = vpop.f32.mrb[0].mxu0
    %v258 = vadd.f32 %v170, %v257
    %v259 = vpop.f32.mrb[0].mxu0
    %260 = vdwg.mxu0
    %v261 = vmul.f32 %v255, 0.2
    %v262 = vmul.f32 %v258, 0.2
    %v263 = vmax.f32 %v255, %v261
    %v264 = vmax.f32 %v258, %v262
    %v265 = vpack.c.bf16 %v264, %v263
    %s266 = scalar_lea.vmem [#allocation7], 64
    %v267 = vld [vmem:[%s266] sm:$0xf]
    %v268 = vld [vmem:[%s266 + $0x4] sm:$0xf]
    %v269 = vld [vmem:[%s266 + $0x8] sm:$0xf]
    %v270 = vld [vmem:[%s266 + $0xc] sm:$0xf]
    %v271 = vld [vmem:[%s266 + $0x10] sm:$0xf]
    %v272 = vld [vmem:[%s266 + $0x14] sm:$0xf]
    %v273 = vld [vmem:[%s266 + $0x18] sm:$0xf]
    %v274 = vld [vmem:[%s266 + $0x1c] sm:$0xf]
    %v275 = vld [vmem:[%s266 + $0x20] sm:$0xf]
    %v276 = vld [vmem:[%s266 + $0x24] sm:$0xf]
    %v277 = vld [vmem:[%s266 + $0x28] sm:$0xf]
    %v278 = vld [vmem:[%s266 + $0x2c] sm:$0xf]
    %v279 = vld [vmem:[%s266 + $0x30] sm:$0xf]
    %v280 = vld [vmem:[%s266 + $0x34] sm:$0xf]
    %v281 = vld [vmem:[%s266 + $0x38] sm:$0xf]
    %v282 = vld [vmem:[%s266 + $0x3c] sm:$0xf]
    %s283 = scalar_lea.vmem %s3, 2
    %v284 = vld [vmem:[%s283] sm:$0x1]
    %v286 = vlaneseq
    %v287 = vshrl.u32 %v286, 7
    %v288 = vsub.s32 0, %v287
    %v289 = vrot.slane %v284, %v288
    %v307 = vunpack.c.l.b16 %v267
    %v308 = vunpack.c.l.b16 %v268
    %v309 = vunpack.c.l.b16 %v269
    %v310 = vunpack.c.l.b16 %v270
    %v311 = vunpack.c.l.b16 %v271
    %v312 = vunpack.c.l.b16 %v272
    %v313 = vunpack.c.l.b16 %v273
    %v314 = vunpack.c.l.b16 %v274
    %v315 = vunpack.c.l.b16 %v275
    %v316 = vunpack.c.l.b16 %v276
    %v317 = vunpack.c.l.b16 %v277
    %v318 = vunpack.c.l.b16 %v278
    %v319 = vunpack.c.l.b16 %v279
    %v320 = vunpack.c.l.b16 %v280
    %v321 = vunpack.c.l.b16 %v281
    %v322 = vunpack.c.l.b16 %v282
    %v323 = vpack.c.b16 %v308, %v307
    %v324 = vpack.c.b16 %v310, %v309
    %v325 = vpack.c.b16 %v312, %v311
    %v326 = vpack.c.b16 %v314, %v313
    %v327 = vpack.c.b16 %v316, %v315
    %v328 = vpack.c.b16 %v318, %v317
    %v329 = vpack.c.b16 %v320, %v319
    %v330 = vpack.c.b16 %v322, %v321
    %339 = vmatprep.subr.bf16.mxu0 0
    %340 = vmatpush1.bf16.msra.mxu0 %v323
    %341 = vmatprep.subr.bf16.mxu0 0
    %342 = vmatpush1.bf16.msra.mxu0 %v324
    %343 = vmatprep.subr.bf16.mxu0 0
    %344 = vmatpush1.bf16.msra.mxu0 %v325
    %345 = vmatprep.subr.bf16.mxu0 0
    %346 = vmatpush1.bf16.msra.mxu0 %v326
    %347 = vmatprep.subr.bf16.mxu0 0
    %348 = vmatpush1.bf16.msra.mxu0 %v327
    %349 = vmatprep.subr.bf16.mxu0 0
    %350 = vmatpush1.bf16.msra.mxu0 %v328
    %351 = vmatprep.subr.bf16.mxu0 0
    %352 = vmatpush1.bf16.msra.mxu0 %v329
    %353 = vmatprep.subr.bf16.mxu0 0
    %354 = vmatpush1.bf16.msra.mxu0 %v330
    %355 = vmatprep.subr.bf16.mxu0 0
    %356 = vmatpush1.bf16.msra.mxu0 0
    %357 = vmatprep.subr.bf16.mxu0 0
    %358 = vmatpush1.bf16.msra.mxu0 0
    %359 = vmatprep.subr.bf16.mxu0 0
    %360 = vmatpush1.bf16.msra.mxu0 0
    %361 = vmatprep.subr.bf16.mxu0 0
    %362 = vmatpush1.bf16.msra.mxu0 0
    %363 = vmatprep.subr.bf16.mxu0 0
    %364 = vmatpush1.bf16.msra.mxu0 0
    %365 = vmatprep.subr.bf16.mxu0 0
    %366 = vmatpush1.bf16.msra.mxu0 0
    %367 = vmatprep.subr.bf16.mxu0 0
    %368 = vmatpush1.bf16.msra.mxu0 0
    %369 = vmatprep.subr.bf16.mxu0 0
    %370 = vmatpush1.bf16.msra.mxu0 0
    %371 = vmatprep.mubr.bf16.mxu0 0
    %372 = vmatmul.mubr.bf16.gmra.mrb[0].mxu0 %v265
    %v373 = vpop.f32.mrb[0].mxu0
    %v374 = vadd.f32 %v289, %v373
    %v375 = vpop.f32.mrb[0].mxu0
    %v376 = vpop.f32.mrb[0].mxu0
    %v377 = vadd.f32 %v289, %v376
    %v378 = vpop.f32.mrb[0].mxu0
    %379 = vdwg.mxu0
    %v380 = vmul.f32 %v374, 0.2
    %v381 = vmul.f32 %v377, 0.2
    %v382 = vmax.f32 %v374, %v380
    %v383 = vmax.f32 %v377, %v381
    %v384 = vpack.c.bf16 %v383, %v382
    %s385 = scalar_lea.vmem [#allocation7], 128
    %v386 = vld [vmem:[%s385] sm:$0xf]
    %v387 = vld [vmem:[%s385 + $0x4] sm:$0xf]
    %v388 = vld [vmem:[%s385 + $0x8] sm:$0xf]
    %v389 = vld [vmem:[%s385 + $0xc] sm:$0xf]
    %v390 = vld [vmem:[%s385 + $0x10] sm:$0xf]
    %v391 = vld [vmem:[%s385 + $0x14] sm:$0xf]
    %v392 = vld [vmem:[%s385 + $0x18] sm:$0xf]
    %v393 = vld [vmem:[%s385 + $0x1c] sm:$0xf]
    %v394 = vld [vmem:[%s385 + $0x20] sm:$0xf]
    %v395 = vld [vmem:[%s385 + $0x24] sm:$0xf]
    %v396 = vld [vmem:[%s385 + $0x28] sm:$0xf]
    %v397 = vld [vmem:[%s385 + $0x2c] sm:$0xf]
    %v398 = vld [vmem:[%s385 + $0x30] sm:$0xf]
    %v399 = vld [vmem:[%s385 + $0x34] sm:$0xf]
    %v400 = vld [vmem:[%s385 + $0x38] sm:$0xf]
    %v401 = vld [vmem:[%s385 + $0x3c] sm:$0xf]
    %s402 = scalar_lea.vmem %s3, 3
    %v403 = vld [vmem:[%s402] sm:$0x1]
    %v405 = vlaneseq
    %v406 = vshrl.u32 %v405, 7
    %v407 = vsub.s32 0, %v406
    %v408 = vrot.slane %v403, %v407
    %v426 = vunpack.c.l.b16 %v386
    %v427 = vunpack.c.l.b16 %v387
    %v428 = vunpack.c.l.b16 %v388
    %v429 = vunpack.c.l.b16 %v389
    %v430 = vunpack.c.l.b16 %v390
    %v431 = vunpack.c.l.b16 %v391
    %v432 = vunpack.c.l.b16 %v392
    %v433 = vunpack.c.l.b16 %v393
    %v434 = vunpack.c.l.b16 %v394
    %v435 = vunpack.c.l.b16 %v395
    %v436 = vunpack.c.l.b16 %v396
    %v437 = vunpack.c.l.b16 %v397
    %v438 = vunpack.c.l.b16 %v398
    %v439 = vunpack.c.l.b16 %v399
    %v440 = vunpack.c.l.b16 %v400
    %v441 = vunpack.c.l.b16 %v401
    %v442 = vpack.c.b16 %v427, %v426
    %v443 = vpack.c.b16 %v429, %v428
    %v444 = vpack.c.b16 %v431, %v430
    %v445 = vpack.c.b16 %v433, %v432
    %v446 = vpack.c.b16 %v435, %v434
    %v447 = vpack.c.b16 %v437, %v436
    %v448 = vpack.c.b16 %v439, %v438
    %v449 = vpack.c.b16 %v441, %v440
    %458 = vmatprep.subr.bf16.mxu0 0
    %459 = vmatpush1.bf16.msra.mxu0 %v442
    %460 = vmatprep.subr.bf16.mxu0 0
    %461 = vmatpush1.bf16.msra.mxu0 %v443
    %462 = vmatprep.subr.bf16.mxu0 0
    %463 = vmatpush1.bf16.msra.mxu0 %v444
    %464 = vmatprep.subr.bf16.mxu0 0
    %465 = vmatpush1.bf16.msra.mxu0 %v445
    %466 = vmatprep.subr.bf16.mxu0 0
    %467 = vmatpush1.bf16.msra.mxu0 %v446
    %468 = vmatprep.subr.bf16.mxu0 0
    %469 = vmatpush1.bf16.msra.mxu0 %v447
    %470 = vmatprep.subr.bf16.mxu0 0
    %471 = vmatpush1.bf16.msra.mxu0 %v448
    %472 = vmatprep.subr.bf16.mxu0 0
    %473 = vmatpush1.bf16.msra.mxu0 %v449
    %474 = vmatprep.subr.bf16.mxu0 0
    %475 = vmatpush1.bf16.msra.mxu0 0
    %476 = vmatprep.subr.bf16.mxu0 0
    %477 = vmatpush1.bf16.msra.mxu0 0
    %478 = vmatprep.subr.bf16.mxu0 0
    %479 = vmatpush1.bf16.msra.mxu0 0
    %480 = vmatprep.subr.bf16.mxu0 0
    %481 = vmatpush1.bf16.msra.mxu0 0
    %482 = vmatprep.subr.bf16.mxu0 0
    %483 = vmatpush1.bf16.msra.mxu0 0
    %484 = vmatprep.subr.bf16.mxu0 0
    %485 = vmatpush1.bf16.msra.mxu0 0
    %486 = vmatprep.subr.bf16.mxu0 0
    %487 = vmatpush1.bf16.msra.mxu0 0
    %488 = vmatprep.subr.bf16.mxu0 0
    %489 = vmatpush1.bf16.msra.mxu0 0
    %490 = vmatprep.mubr.bf16.mxu0 0
    %491 = vmatmul.mubr.bf16.gmra.mrb[0].mxu0 %v384
    %v492 = vpop.f32.mrb[0].mxu0
    %v493 = vadd.f32 %v408, %v492
    %v494 = vpop.f32.mrb[0].mxu0
    %v495 = vpop.f32.mrb[0].mxu0
    %v496 = vadd.f32 %v408, %v495
    %v497 = vpop.f32.mrb[0].mxu0
    %498 = vdwg.mxu0
    %v499 = vmul.f32 %v493, 0.2
    %v500 = vmul.f32 %v496, 0.2
    %v501 = vmax.f32 %v493, %v499
    %v502 = vmax.f32 %v496, %v500
    %v503 = vpack.c.bf16 %v502, %v501
    %s504 = scalar_lea.vmem [#allocation7], 192
    %v505 = vld [vmem:[%s504] sm:$0xf]
    %v506 = vld [vmem:[%s504 + $0x4] sm:$0xf]
    %v507 = vld [vmem:[%s504 + $0x8] sm:$0xf]
    %v508 = vld [vmem:[%s504 + $0xc] sm:$0xf]
    %v509 = vld [vmem:[%s504 + $0x10] sm:$0xf]
    %v510 = vld [vmem:[%s504 + $0x14] sm:$0xf]
    %v511 = vld [vmem:[%s504 + $0x18] sm:$0xf]
    %v512 = vld [vmem:[%s504 + $0x1c] sm:$0xf]
    %v513 = vld [vmem:[%s504 + $0x20] sm:$0xf]
    %v514 = vld [vmem:[%s504 + $0x24] sm:$0xf]
    %v515 = vld [vmem:[%s504 + $0x28] sm:$0xf]
    %v516 = vld [vmem:[%s504 + $0x2c] sm:$0xf]
    %v517 = vld [vmem:[%s504 + $0x30] sm:$0xf]
    %v518 = vld [vmem:[%s504 + $0x34] sm:$0xf]
    %v519 = vld [vmem:[%s504 + $0x38] sm:$0xf]
    %v520 = vld [vmem:[%s504 + $0x3c] sm:$0xf]
    %s521 = scalar_lea.vmem %s3, 4
    %v522 = vld [vmem:[%s521] sm:$0x1]
    %v524 = vlaneseq
    %v525 = vshrl.u32 %v524, 7
    %v526 = vsub.s32 0, %v525
    %v527 = vrot.slane %v522, %v526
    %v545 = vunpack.c.l.b16 %v505
    %v546 = vunpack.c.l.b16 %v506
    %v547 = vunpack.c.l.b16 %v507
    %v548 = vunpack.c.l.b16 %v508
    %v549 = vunpack.c.l.b16 %v509
    %v550 = vunpack.c.l.b16 %v510
    %v551 = vunpack.c.l.b16 %v511
    %v552 = vunpack.c.l.b16 %v512
    %v553 = vunpack.c.l.b16 %v513
    %v554 = vunpack.c.l.b16 %v514
    %v555 = vunpack.c.l.b16 %v515
    %v556 = vunpack.c.l.b16 %v516
    %v557 = vunpack.c.l.b16 %v517
    %v558 = vunpack.c.l.b16 %v518
    %v559 = vunpack.c.l.b16 %v519
    %v560 = vunpack.c.l.b16 %v520
    %v561 = vpack.c.b16 %v546, %v545
    %v562 = vpack.c.b16 %v548, %v547
    %v563 = vpack.c.b16 %v550, %v549
    %v564 = vpack.c.b16 %v552, %v551
    %v565 = vpack.c.b16 %v554, %v553
    %v566 = vpack.c.b16 %v556, %v555
    %v567 = vpack.c.b16 %v558, %v557
    %v568 = vpack.c.b16 %v560, %v559
    %577 = vmatprep.subr.bf16.mxu0 0
    %578 = vmatpush1.bf16.msra.mxu0 %v561
    %579 = vmatprep.subr.bf16.mxu0 0
    %580 = vmatpush1.bf16.msra.mxu0 %v562
    %581 = vmatprep.subr.bf16.mxu0 0
    %582 = vmatpush1.bf16.msra.mxu0 %v563
    %583 = vmatprep.subr.bf16.mxu0 0
    %584 = vmatpush1.bf16.msra.mxu0 %v564
    %585 = vmatprep.subr.bf16.mxu0 0
    %586 = vmatpush1.bf16.msra.mxu0 %v565
    %587 = vmatprep.subr.bf16.mxu0 0
    %588 = vmatpush1.bf16.msra.mxu0 %v566
    %589 = vmatprep.subr.bf16.mxu0 0
    %590 = vmatpush1.bf16.msra.mxu0 %v567
    %591 = vmatprep.subr.bf16.mxu0 0
    %592 = vmatpush1.bf16.msra.mxu0 %v568
    %593 = vmatprep.subr.bf16.mxu0 0
    %594 = vmatpush1.bf16.msra.mxu0 0
    %595 = vmatprep.subr.bf16.mxu0 0
    %596 = vmatpush1.bf16.msra.mxu0 0
    %597 = vmatprep.subr.bf16.mxu0 0
    %598 = vmatpush1.bf16.msra.mxu0 0
    %599 = vmatprep.subr.bf16.mxu0 0
    %600 = vmatpush1.bf16.msra.mxu0 0
    %601 = vmatprep.subr.bf16.mxu0 0
    %602 = vmatpush1.bf16.msra.mxu0 0
    %603 = vmatprep.subr.bf16.mxu0 0
    %604 = vmatpush1.bf16.msra.mxu0 0
    %605 = vmatprep.subr.bf16.mxu0 0
    %606 = vmatpush1.bf16.msra.mxu0 0
    %607 = vmatprep.subr.bf16.mxu0 0
    %608 = vmatpush1.bf16.msra.mxu0 0
    %609 = vmatprep.mubr.bf16.mxu0 0
    %610 = vmatmul.mubr.bf16.gmra.mrb[0].mxu0 %v503
    %v611 = vpop.f32.mrb[0].mxu0
    %v612 = vadd.f32 %v527, %v611
    %v613 = vpop.f32.mrb[0].mxu0
    %v614 = vpop.f32.mrb[0].mxu0
    %v615 = vadd.f32 %v527, %v614
    %v616 = vpop.f32.mrb[0].mxu0
    %617 = vdwg.mxu0
    %v618 = vmul.f32 %v612, 0.2
    %v619 = vmul.f32 %v615, 0.2
    %v620 = vmax.f32 %v612, %v618
    %v621 = vmax.f32 %v615, %v619
    %v622 = vpack.c.bf16 %v621, %v620
    %s623 = scalar_lea.vmem [#allocation7], 256
    %v624 = vld [vmem:[%s623] sm:$0xf]
    %v625 = vld [vmem:[%s623 + $0x4] sm:$0xf]
    %v626 = vld [vmem:[%s623 + $0x8] sm:$0xf]
    %v627 = vld [vmem:[%s623 + $0xc] sm:$0xf]
    %v628 = vld [vmem:[%s623 + $0x10] sm:$0xf]
    %v629 = vld [vmem:[%s623 + $0x14] sm:$0xf]
    %v630 = vld [vmem:[%s623 + $0x18] sm:$0xf]
    %v631 = vld [vmem:[%s623 + $0x1c] sm:$0xf]
    %v632 = vld [vmem:[%s623 + $0x20] sm:$0xf]
    %v633 = vld [vmem:[%s623 + $0x24] sm:$0xf]
    %v634 = vld [vmem:[%s623 + $0x28] sm:$0xf]
    %v635 = vld [vmem:[%s623 + $0x2c] sm:$0xf]
    %v636 = vld [vmem:[%s623 + $0x30] sm:$0xf]
    %v637 = vld [vmem:[%s623 + $0x34] sm:$0xf]
    %v638 = vld [vmem:[%s623 + $0x38] sm:$0xf]
    %v639 = vld [vmem:[%s623 + $0x3c] sm:$0xf]
    %s640 = scalar_lea.vmem %s3, 5
    %v641 = vld [vmem:[%s640] sm:$0x1]
    %v643 = vlaneseq
    %v644 = vshrl.u32 %v643, 7
    %v645 = vsub.s32 0, %v644
    %v646 = vrot.slane %v641, %v645
    %v664 = vunpack.c.l.b16 %v624
    %v665 = vunpack.c.l.b16 %v625
    %v666 = vunpack.c.l.b16 %v626
    %v667 = vunpack.c.l.b16 %v627
    %v668 = vunpack.c.l.b16 %v628
    %v669 = vunpack.c.l.b16 %v629
    %v670 = vunpack.c.l.b16 %v630
    %v671 = vunpack.c.l.b16 %v631
    %v672 = vunpack.c.l.b16 %v632
    %v673 = vunpack.c.l.b16 %v633
    %v674 = vunpack.c.l.b16 %v634
    %v675 = vunpack.c.l.b16 %v635
    %v676 = vunpack.c.l.b16 %v636
    %v677 = vunpack.c.l.b16 %v637
    %v678 = vunpack.c.l.b16 %v638
    %v679 = vunpack.c.l.b16 %v639
    %v680 = vpack.c.b16 %v665, %v664
    %v681 = vpack.c.b16 %v667, %v666
    %v682 = vpack.c.b16 %v669, %v668
    %v683 = vpack.c.b16 %v671, %v670
    %v684 = vpack.c.b16 %v673, %v672
    %v685 = vpack.c.b16 %v675, %v674
    %v686 = vpack.c.b16 %v677, %v676
    %v687 = vpack.c.b16 %v679, %v678
    %696 = vmatprep.subr.bf16.mxu0 0
    %697 = vmatpush1.bf16.msra.mxu0 %v680
    %698 = vmatprep.subr.bf16.mxu0 0
    %699 = vmatpush1.bf16.msra.mxu0 %v681
    %700 = vmatprep.subr.bf16.mxu0 0
    %701 = vmatpush1.bf16.msra.mxu0 %v682
    %702 = vmatprep.subr.bf16.mxu0 0
    %703 = vmatpush1.bf16.msra.mxu0 %v683
    %704 = vmatprep.subr.bf16.mxu0 0
    %705 = vmatpush1.bf16.msra.mxu0 %v684
    %706 = vmatprep.subr.bf16.mxu0 0
    %707 = vmatpush1.bf16.msra.mxu0 %v685
    %708 = vmatprep.subr.bf16.mxu0 0
    %709 = vmatpush1.bf16.msra.mxu0 %v686
    %710 = vmatprep.subr.bf16.mxu0 0
    %711 = vmatpush1.bf16.msra.mxu0 %v687
    %712 = vmatprep.subr.bf16.mxu0 0
    %713 = vmatpush1.bf16.msra.mxu0 0
    %714 = vmatprep.subr.bf16.mxu0 0
    %715 = vmatpush1.bf16.msra.mxu0 0
    %716 = vmatprep.subr.bf16.mxu0 0
    %717 = vmatpush1.bf16.msra.mxu0 0
    %718 = vmatprep.subr.bf16.mxu0 0
    %719 = vmatpush1.bf16.msra.mxu0 0
    %720 = vmatprep.subr.bf16.mxu0 0
    %721 = vmatpush1.bf16.msra.mxu0 0
    %722 = vmatprep.subr.bf16.mxu0 0
    %723 = vmatpush1.bf16.msra.mxu0 0
    %724 = vmatprep.subr.bf16.mxu0 0
    %725 = vmatpush1.bf16.msra.mxu0 0
    %726 = vmatprep.subr.bf16.mxu0 0
    %727 = vmatpush1.bf16.msra.mxu0 0
    %728 = vmatprep.mubr.bf16.mxu0 0
    %729 = vmatmul.mubr.bf16.gmra.mrb[0].mxu0 %v622
    %v730 = vpop.f32.mrb[0].mxu0
    %v731 = vadd.f32 %v646, %v730
    %v732 = vpop.f32.mrb[0].mxu0
    %v733 = vpop.f32.mrb[0].mxu0
    %v734 = vadd.f32 %v646, %v733
    %v735 = vpop.f32.mrb[0].mxu0
    %736 = vdwg.mxu0
    %v737 = vmul.f32 %v731, 0.2
    %v738 = vmul.f32 %v734, 0.2
    %v739 = vmax.f32 %v731, %v737
    %v740 = vmax.f32 %v734, %v738
    %v741 = vpack.c.bf16 %v740, %v739
    %s742 = scalar_lea.vmem [#allocation7], 320
    %v743 = vld [vmem:[%s742] sm:$0xf]
    %v744 = vld [vmem:[%s742 + $0x4] sm:$0xf]
    %v745 = vld [vmem:[%s742 + $0x8] sm:$0xf]
    %v746 = vld [vmem:[%s742 + $0xc] sm:$0xf]
    %v747 = vld [vmem:[%s742 + $0x10] sm:$0xf]
    %v748 = vld [vmem:[%s742 + $0x14] sm:$0xf]
    %v749 = vld [vmem:[%s742 + $0x18] sm:$0xf]
    %v750 = vld [vmem:[%s742 + $0x1c] sm:$0xf]
    %v751 = vld [vmem:[%s742 + $0x20] sm:$0xf]
    %v752 = vld [vmem:[%s742 + $0x24] sm:$0xf]
    %v753 = vld [vmem:[%s742 + $0x28] sm:$0xf]
    %v754 = vld [vmem:[%s742 + $0x2c] sm:$0xf]
    %v755 = vld [vmem:[%s742 + $0x30] sm:$0xf]
    %v756 = vld [vmem:[%s742 + $0x34] sm:$0xf]
    %v757 = vld [vmem:[%s742 + $0x38] sm:$0xf]
    %v758 = vld [vmem:[%s742 + $0x3c] sm:$0xf]
    %s759 = scalar_lea.vmem %s3, 6
    %v760 = vld [vmem:[%s759] sm:$0x1]
    %v762 = vlaneseq
    %v763 = vshrl.u32 %v762, 7
    %v764 = vsub.s32 0, %v763
    %v765 = vrot.slane %v760, %v764
    %v783 = vunpack.c.l.b16 %v743
    %v784 = vunpack.c.l.b16 %v744
    %v785 = vunpack.c.l.b16 %v745
    %v786 = vunpack.c.l.b16 %v746
    %v787 = vunpack.c.l.b16 %v747
    %v788 = vunpack.c.l.b16 %v748
    %v789 = vunpack.c.l.b16 %v749
    %v790 = vunpack.c.l.b16 %v750
    %v791 = vunpack.c.l.b16 %v751
    %v792 = vunpack.c.l.b16 %v752
    %v793 = vunpack.c.l.b16 %v753
    %v794 = vunpack.c.l.b16 %v754
    %v795 = vunpack.c.l.b16 %v755
    %v796 = vunpack.c.l.b16 %v756
    %v797 = vunpack.c.l.b16 %v757
    %v798 = vunpack.c.l.b16 %v758
    %v799 = vpack.c.b16 %v784, %v783
    %v800 = vpack.c.b16 %v786, %v785
    %v801 = vpack.c.b16 %v788, %v787
    %v802 = vpack.c.b16 %v790, %v789
    %v803 = vpack.c.b16 %v792, %v791
    %v804 = vpack.c.b16 %v794, %v793
    %v805 = vpack.c.b16 %v796, %v795
    %v806 = vpack.c.b16 %v798, %v797
    %815 = vmatprep.subr.bf16.mxu0 0
    %816 = vmatpush1.bf16.msra.mxu0 %v799
    %817 = vmatprep.subr.bf16.mxu0 0
    %818 = vmatpush1.bf16.msra.mxu0 %v800
    %819 = vmatprep.subr.bf16.mxu0 0
    %820 = vmatpush1.bf16.msra.mxu0 %v801
    %821 = vmatprep.subr.bf16.mxu0 0
    %822 = vmatpush1.bf16.msra.mxu0 %v802
    %823 = vmatprep.subr.bf16.mxu0 0
    %824 = vmatpush1.bf16.msra.mxu0 %v803
    %825 = vmatprep.subr.bf16.mxu0 0
    %826 = vmatpush1.bf16.msra.mxu0 %v804
    %827 = vmatprep.subr.bf16.mxu0 0
    %828 = vmatpush1.bf16.msra.mxu0 %v805
    %829 = vmatprep.subr.bf16.mxu0 0
    %830 = vmatpush1.bf16.msra.mxu0 %v806
    %831 = vmatprep.subr.bf16.mxu0 0
    %832 = vmatpush1.bf16.msra.mxu0 0
    %833 = vmatprep.subr.bf16.mxu0 0
    %834 = vmatpush1.bf16.msra.mxu0 0
    %835 = vmatprep.subr.bf16.mxu0 0
    %836 = vmatpush1.bf16.msra.mxu0 0
    %837 = vmatprep.subr.bf16.mxu0 0
    %838 = vmatpush1.bf16.msra.mxu0 0
    %839 = vmatprep.subr.bf16.mxu0 0
    %840 = vmatpush1.bf16.msra.mxu0 0
    %841 = vmatprep.subr.bf16.mxu0 0
    %842 = vmatpush1.bf16.msra.mxu0 0
    %843 = vmatprep.subr.bf16.mxu0 0
    %844 = vmatpush1.bf16.msra.mxu0 0
    %845 = vmatprep.subr.bf16.mxu0 0
    %846 = vmatpush1.bf16.msra.mxu0 0
    %847 = vmatprep.mubr.bf16.mxu0 0
    %848 = vmatmul.mubr.bf16.gmra.mrb[0].mxu0 %v741
    %v849 = vpop.f32.mrb[0].mxu0
    %v850 = vadd.f32 %v765, %v849
    %v851 = vpop.f32.mrb[0].mxu0
    %v852 = vpop.f32.mrb[0].mxu0
    %v853 = vadd.f32 %v765, %v852
    %v854 = vpop.f32.mrb[0].mxu0
    %855 = vdwg.mxu0
    %v856 = vmul.f32 %v850, 0.2
    %v857 = vmul.f32 %v853, 0.2
    %v858 = vmax.f32 %v850, %v856
    %v859 = vmax.f32 %v853, %v857
    %v860 = vpack.c.bf16 %v859, %v858
    %s861 = scalar_lea.vmem [#allocation7], 384
    %v862 = vld [vmem:[%s861] sm:$0xf]
    %v863 = vld [vmem:[%s861 + $0x4] sm:$0xf]
    %v864 = vld [vmem:[%s861 + $0x8] sm:$0xf]
    %v865 = vld [vmem:[%s861 + $0xc] sm:$0xf]
    %v866 = vld [vmem:[%s861 + $0x10] sm:$0xf]
    %v867 = vld [vmem:[%s861 + $0x14] sm:$0xf]
    %v868 = vld [vmem:[%s861 + $0x18] sm:$0xf]
    %v869 = vld [vmem:[%s861 + $0x1c] sm:$0xf]
    %v870 = vld [vmem:[%s861 + $0x20] sm:$0xf]
    %v871 = vld [vmem:[%s861 + $0x24] sm:$0xf]
    %v872 = vld [vmem:[%s861 + $0x28] sm:$0xf]
    %v873 = vld [vmem:[%s861 + $0x2c] sm:$0xf]
    %v874 = vld [vmem:[%s861 + $0x30] sm:$0xf]
    %v875 = vld [vmem:[%s861 + $0x34] sm:$0xf]
    %v876 = vld [vmem:[%s861 + $0x38] sm:$0xf]
    %v877 = vld [vmem:[%s861 + $0x3c] sm:$0xf]
    %s878 = scalar_lea.vmem %s3, 7
    %v879 = vld [vmem:[%s878] sm:$0x1]
    %v881 = vlaneseq
    %v882 = vshrl.u32 %v881, 7
    %v883 = vsub.s32 0, %v882
    %v884 = vrot.slane %v879, %v883
    %v902 = vunpack.c.l.b16 %v862
    %v903 = vunpack.c.l.b16 %v863
    %v904 = vunpack.c.l.b16 %v864
    %v905 = vunpack.c.l.b16 %v865
    %v906 = vunpack.c.l.b16 %v866
    %v907 = vunpack.c.l.b16 %v867
    %v908 = vunpack.c.l.b16 %v868
    %v909 = vunpack.c.l.b16 %v869
    %v910 = vunpack.c.l.b16 %v870
    %v911 = vunpack.c.l.b16 %v871
    %v912 = vunpack.c.l.b16 %v872
    %v913 = vunpack.c.l.b16 %v873
    %v914 = vunpack.c.l.b16 %v874
    %v915 = vunpack.c.l.b16 %v875
    %v916 = vunpack.c.l.b16 %v876
    %v917 = vunpack.c.l.b16 %v877
    %v918 = vpack.c.b16 %v903, %v902
    %v919 = vpack.c.b16 %v905, %v904
    %v920 = vpack.c.b16 %v907, %v906
    %v921 = vpack.c.b16 %v909, %v908
    %v922 = vpack.c.b16 %v911, %v910
    %v923 = vpack.c.b16 %v913, %v912
    %v924 = vpack.c.b16 %v915, %v914
    %v925 = vpack.c.b16 %v917, %v916
    %934 = vmatprep.subr.bf16.mxu0 0
    %935 = vmatpush1.bf16.msra.mxu0 %v918
    %936 = vmatprep.subr.bf16.mxu0 0
    %937 = vmatpush1.bf16.msra.mxu0 %v919
    %938 = vmatprep.subr.bf16.mxu0 0
    %939 = vmatpush1.bf16.msra.mxu0 %v920
    %940 = vmatprep.subr.bf16.mxu0 0
    %941 = vmatpush1.bf16.msra.mxu0 %v921
    %942 = vmatprep.subr.bf16.mxu0 0
    %943 = vmatpush1.bf16.msra.mxu0 %v922
    %944 = vmatprep.subr.bf16.mxu0 0
    %945 = vmatpush1.bf16.msra.mxu0 %v923
    %946 = vmatprep.subr.bf16.mxu0 0
    %947 = vmatpush1.bf16.msra.mxu0 %v924
    %948 = vmatprep.subr.bf16.mxu0 0
    %949 = vmatpush1.bf16.msra.mxu0 %v925
    %950 = vmatprep.subr.bf16.mxu0 0
    %951 = vmatpush1.bf16.msra.mxu0 0
    %952 = vmatprep.subr.bf16.mxu0 0
    %953 = vmatpush1.bf16.msra.mxu0 0
    %954 = vmatprep.subr.bf16.mxu0 0
    %955 = vmatpush1.bf16.msra.mxu0 0
    %956 = vmatprep.subr.bf16.mxu0 0
    %957 = vmatpush1.bf16.msra.mxu0 0
    %958 = vmatprep.subr.bf16.mxu0 0
    %959 = vmatpush1.bf16.msra.mxu0 0
    %960 = vmatprep.subr.bf16.mxu0 0
    %961 = vmatpush1.bf16.msra.mxu0 0
    %962 = vmatprep.subr.bf16.mxu0 0
    %963 = vmatpush1.bf16.msra.mxu0 0
    %964 = vmatprep.subr.bf16.mxu0 0
    %965 = vmatpush1.bf16.msra.mxu0 0
    %966 = vmatprep.mubr.bf16.mxu0 0
    %967 = vmatmul.mubr.bf16.gmra.mrb[0].mxu0 %v860
    %v968 = vpop.f32.mrb[0].mxu0
    %v969 = vadd.f32 %v884, %v968
    %v970 = vpop.f32.mrb[0].mxu0
    %v971 = vpop.f32.mrb[0].mxu0
    %v972 = vadd.f32 %v884, %v971
    %v973 = vpop.f32.mrb[0].mxu0
    %974 = vdwg.mxu0
    %v975 = vmul.f32 %v969, 0.2
    %v976 = vmul.f32 %v972, 0.2
    %v977 = vmax.f32 %v969, %v975
    %v978 = vmax.f32 %v972, %v976
    %979 = vst [vmem:[#allocation8] sm:$0xff] %v977
    %980 = vst [vmem:[#allocation8 + $0x8] sm:$0xff] %v978
    // Predicated region
    $region30: #{tpu_custom_call.1} parent=1 // pred_check
      _
    $region31: #{tpu_custom_call.1} parent=1 // pred_check_branch
      %982 = sbr.rel (0) target = $region33
    $region32: #{tpu_custom_call.1} parent=1 // pred_region
      %s984 = ssub.s32 256, 256
      %985 = vsyncadd [#allocation4], %s984
      %s986 = sshll.u32 [#allocation8], 4
      %s987 = int_to_ptr.vmem [resolvable:$true] %s986
      %992 = dma.vmem_to_hbm [thread:$0]  %s987, 256, %s4, [#allocation4], 128, 128, 8
    $region33: #{tpu_custom_call.1} parent=1 // pred_fallthru
      _
    // Predicated region
    $region34: #{tpu_custom_call.1} parent=1 // pred_check
      _
    $region35: #{tpu_custom_call.1} parent=1 // pred_check_branch
      %994 = sbr.rel (0) target = $region37
    $region36: #{tpu_custom_call.1} parent=1 // pred_region
      %995 = dma.done [#allocation4], 256
    $region37: #{tpu_custom_call.1} parent=1 // pred_fallthru
      _
    %996 = vsyncpa [#allocation3], 1
    %997 = vsyncpa [#allocation6], 1
    %998 = vsyncpa [#allocation4], 1

</llo_original>
